<compile_context>
chip_gen: v6e
topology: v6e:2x2x1
jax: 0.10.0
libtpu: 0.0.40
codegen_flags: <defaults>
</compile_context>

<pallas_src>
import math
import functools

import jax
import jax.numpy as jnp
import numpy as np
from jax.experimental import pallas as pl
from jax.experimental.pallas import tpu as pltpu


def _round_up(a, m):
    return -(-a // m) * m


def _ce_kernel(x_ref, p_ref, o_ref, *, div_term, k, embed):
    # x_ref: (TN, k)  f32       -- k consecutive x values folded per row
    # p_ref: (2, TE)  f32       -- row 0 = omega (tiled k times when k > 1), row 1 = bias
    # o_ref: (TN, TE) out dtype -- lane-dense output tile (TE = k * embed when k > 1)
    rows = x_ref.shape[0]
    te = o_ref.shape[1]

    x = x_ref[...]                       # (TN, k)
    omega = p_ref[0:1, :]                # (1, TE)
    bias = p_ref[1:2, :]                 # (1, TE)

    if k == 1:
        xb = jnp.broadcast_to(x, (rows, te))
    else:
        # Replicate x column j across its `embed` lanes:  [x0*E | x1*E | ... ].
        # Lane placement is select/XLU work, small next to the cos polynomial
        # which dominates the VALU slots.
        # TODO(synk): if VALU-bound (v7x / bf16 out), move replication to the idle
        # MXU via a constant 0/1 selector matmul (x @ S, precision=HIGHEST).
        xb = jnp.concatenate(
            [jnp.broadcast_to(x[:, j:j + 1], (rows, embed)) for j in range(k)],
            axis=1,
        )

    enc = jnp.cos(xb * omega + bias)     # VPU mul/add + cos polynomial
    o_ref[...] = (div_term * enc).astype(o_ref.dtype)


def continuous_encoding(x, omega, bias, *, out_dtype=jnp.float32):
    """
    :param x:     (batch, seq) float
    :param omega: (embed,)     float
    :param bias:  (embed,)     float
    :return:      (batch, seq, embed) out_dtype
    """
    batch, seq = x.shape
    embed = int(omega.shape[0])
    div_term = math.sqrt(1.0 / embed)
    n = batch * seq
    out_itemsize = int(np.dtype(out_dtype).itemsize)

    # ---- lane-dense fold --------------------------------------------------
    # Fold k x values per kernel row so the output last dim e_eff = lcm(embed,128)
    # is a multiple of 128 (unmasked HBM stores). Only fold while e_eff stays small.
    k = 1
    if embed < 128:
        kc = 128 // math.gcd(embed, 128)
        if kc * embed <= 1024:
            k = kc
    e_eff = k * embed

    n_pad = _round_up(n, k)
    x_flat = x.reshape(n).astype(jnp.float32)
    if n_pad != n:
        # NOTE: this forces a trailing [:n] slice (one extra pass over the output
        # in XLA). Prefer batch*seq % k == 0 upstream, or let the slice fuse into
        # the downstream consumer.
        x_flat = jnp.pad(x_flat, (0, n_pad - n))
    n_rows = n_pad // k
    x2 = x_flat.reshape(n_rows, k)

    omega_f = omega.astype(jnp.float32)
    bias_f = bias.astype(jnp.float32)
    if k > 1:
        omega_f = jnp.tile(omega_f, k)
        bias_f = jnp.tile(bias_f, k)
    params = jnp.stack([omega_f, bias_f], axis=0)          # (2, e_eff)

    # ---- tile selection (VMEM byte budget, generation-aware) ---------------
    # Embed tile: full e_eff when small (required when k > 1, where e_eff is a
    # multiple of 128 by construction); otherwise 512-lane slabs with a masked
    # remainder block so large / non-128-multiple embeds stay pipelined and bounded.
    if k > 1 or e_eff <= 512:
        TE = e_eff
    else:
        TE = 512
    TEp = _round_up(TE, 128)                               # lane-padded width in VMEM

    # Row tile: largest multiple of 16 whose double-buffered working set
    # (out + lane-padded x input + ~4 tile-sized f32 elementwise temps) stays
    # under ~24 MiB -> 2-8 MiB output tiles, fits v7x's 64 MiB VMEM with headroom.
    row_mult = 16                                          # covers bf16 sublane packing
    budget = 24 * 1024 * 1024
    per_row = 2 * TEp * out_itemsize + 2 * 128 * 4 + 4 * TEp * 4
    TN = min(8192, budget // per_row)
    # v7x megacore: keep >= ~4 row blocks so both TensorCores get work.
    if n_rows >= 1024:
        TN = min(TN, _round_up(pl.cdiv(n_rows, 4), row_mult))
    if TN >= n_rows:
        TN = n_rows                                        # full dim: no alignment needed
    else:
        TN = max(row_mult, (TN // row_mult) * row_mult)

    grid = (pl.cdiv(n_rows, TN), pl.cdiv(e_eff, TE))

    # Explicit scoped-VMEM limit (defaults: 16 MiB v5e, 32 MiB v6e/v7x) with headroom.
    ws = TN * per_row + 2 * 2 * TEp * 4
    vmem_limit = min(int(ws) + 16 * 1024 * 1024, 56 * 1024 * 1024)

    kernel = functools.partial(_ce_kernel, div_term=div_term, k=k, embed=embed)

    cost = pl.CostEstimate(
        flops=3 * n * embed,               # mul + bias add + div_term scale
        transcendentals=n * embed,         # one cos per output element
        bytes_accessed=4 * (n + 2 * e_eff) + out_itemsize * n * embed,
    )

    out = pl.pallas_call(
        kernel,
        out_shape=jax.ShapeDtypeStruct((n_rows, e_eff), out_dtype),
        grid_spec=pltpu.PrefetchScalarGridSpec(
            num_scalar_prefetch=0,
            grid=grid,
            in_specs=[
                pl.BlockSpec((TN, k), lambda i, j: (i, 0)),     # folded x rows
                pl.BlockSpec((2, TE), lambda i, j: (0, j)),     # omega/bias slab
            ],
            out_specs=pl.BlockSpec((TN, TE), lambda i, j: (i, j)),
        ),
        compiler_params=pltpu.CompilerParams(
            dimension_semantics=("parallel", "parallel"),
            vmem_limit_bytes=vmem_limit,
        ),
        cost_estimate=cost,
    )(x2, params)

    out = out.reshape(n_pad, embed)
    if n_pad != n:
        out = out[:n]                      # extra pass; see NOTE above
    return out.reshape(batch, seq, embed)


def _reference(x, omega, bias, embed):
    div_term = math.sqrt(1.0 / embed)
    return div_term * jnp.cos(
        x[..., None] * omega.reshape(1, 1, -1) + bias.reshape(1, 1, -1)
    )


if __name__ == "__main__":
    embed = 32

    # Deterministic parameter init matching the PyTorch module's __init__.
    omega_np = (1.0 / 10 ** np.linspace(0, 9, embed)).astype(np.float32)
    omega = jnp.asarray(omega_np)
    bias = jnp.zeros((embed,), dtype=jnp.float32)

    key = jax.random.PRNGKey(0)

    # Case 1: batch=2, seq=8 (n divisible by the fold factor k = 128//32 = 4).
    batch, seq = 2, 8
    x = jax.random.normal(key, (batch, seq), dtype=jnp.float32) * 10.0
    out = jax.block_until_ready(continuous_encoding(x, omega, bias))
    ref = _reference(x, omega, bias, embed)
    np.testing.assert_allclose(np.asarray(out), np.asarray(ref), rtol=1e-5, atol=1e-5)
    assert out.shape == (batch, seq, embed)

    # Case 2: n not a multiple of k -> exercises the padded-tail path.
    batch2, seq2 = 3, 7
    x2 = jax.random.normal(jax.random.PRNGKey(1), (batch2, seq2), dtype=jnp.float32) * 5.0
    out2 = jax.block_until_ready(continuous_encoding(x2, omega, bias))
    ref2 = _reference(x2, omega, bias, embed)
    np.testing.assert_allclose(np.asarray(out2), np.asarray(ref2), rtol=1e-5, atol=1e-5)
    assert out2.shape == (batch2, seq2, embed)

    # Case 3: larger n -> exercises the multi-block row grid / megacore clamp path.
    batch3, seq3 = 4, 1024
    x3 = jax.random.normal(jax.random.PRNGKey(2), (batch3, seq3), dtype=jnp.float32) * 10.0
    out3 = jax.block_until_ready(continuous_encoding(x3, omega, bias))
    ref3 = _reference(x3, omega, bias, embed)
    np.testing.assert_allclose(np.asarray(out3), np.asarray(ref3), rtol=1e-5, atol=1e-5)
    assert out3.shape == (batch3, seq3, embed)

    print("KERNEL_OK")
</pallas_src>

<mosaic_0001>
module attributes {stable_mosaic.version = 11 : i64} {
  func.func @_ce_kernel(%arg0: i32, %arg1: i32, %arg2: memref<4x4xf32, #tpu.memory_space<vmem>>, %arg3: memref<2x128xf32, #tpu.memory_space<vmem>>, %arg4: memref<4x128xf32, #tpu.memory_space<vmem>>) attributes {dimension_semantics = [#tpu.dimension_semantics<parallel>, #tpu.dimension_semantics<parallel>], iteration_bounds = array<i64: 1, 1>, scalar_prefetch = 0 : i64, scratch_operands = 0 : i64, tpu.core_type = #tpu.core_type<tc>, window_params = [{transform_indices = @transform_0, window_bounds = array<i64: 4, 4>}, {transform_indices = @transform_1, window_bounds = array<i64: 2, 128>}, {transform_indices = @transform_2, window_bounds = array<i64: 4, 128>}]} {
    %c0 = arith.constant 0 : index
    %c0_0 = arith.constant 0 : index
    %0 = vector.load %arg2[%c0, %c0_0] : memref<4x4xf32, #tpu.memory_space<vmem>>, vector<4x4xf32>
    %c0_1 = arith.constant 0 : index
    %c0_2 = arith.constant 0 : index
    %1 = vector.load %arg3[%c0_1, %c0_2] : memref<2x128xf32, #tpu.memory_space<vmem>>, vector<1x128xf32>
    %c1 = arith.constant 1 : index
    %c0_3 = arith.constant 0 : index
    %2 = vector.load %arg3[%c1, %c0_3] : memref<2x128xf32, #tpu.memory_space<vmem>>, vector<1x128xf32>
    %3 = vector.extract_strided_slice %0 {offsets = [0, 0], sizes = [4, 1], strides = [1, 1]} : vector<4x4xf32> to vector<4x1xf32>
    %4 = vector.shape_cast %3 : vector<4x1xf32> to vector<4x1xf32>
    %5 = vector.broadcast %4 : vector<4x1xf32> to vector<4x32xf32>
    %6 = vector.extract_strided_slice %0 {offsets = [0, 1], sizes = [4, 1], strides = [1, 1]} : vector<4x4xf32> to vector<4x1xf32>
    %7 = vector.shape_cast %6 : vector<4x1xf32> to vector<4x1xf32>
    %8 = vector.broadcast %7 : vector<4x1xf32> to vector<4x32xf32>
    %9 = vector.extract_strided_slice %0 {offsets = [0, 2], sizes = [4, 1], strides = [1, 1]} : vector<4x4xf32> to vector<4x1xf32>
    %10 = vector.shape_cast %9 : vector<4x1xf32> to vector<4x1xf32>
    %11 = vector.broadcast %10 : vector<4x1xf32> to vector<4x32xf32>
    %12 = vector.extract_strided_slice %0 {offsets = [0, 3], sizes = [4, 1], strides = [1, 1]} : vector<4x4xf32> to vector<4x1xf32>
    %13 = vector.shape_cast %12 : vector<4x1xf32> to vector<4x1xf32>
    %14 = vector.broadcast %13 : vector<4x1xf32> to vector<4x32xf32>
    %15 = tpu.concatenate %5, %8, %11, %14 in 1 : vector<4x32xf32>, vector<4x32xf32>, vector<4x32xf32>, vector<4x32xf32> -> vector<4x128xf32>
    %16 = vector.broadcast %1 : vector<1x128xf32> to vector<4x128xf32>
    %17 = arith.mulf %15, %16 : vector<4x128xf32>
    %18 = vector.broadcast %2 : vector<1x128xf32> to vector<4x128xf32>
    %19 = arith.addf %17, %18 : vector<4x128xf32>
    %20 = math.cos %19 : vector<4x128xf32>
    %cst = arith.constant 0.176776692 : f32
    %21 = vector.broadcast %cst : f32 to vector<4x128xf32>
    %22 = arith.mulf %21, %20 : vector<4x128xf32>
    %c0_4 = arith.constant 0 : index
    %c0_5 = arith.constant 0 : index
    %23 = vector.load %arg4[%c0_4, %c0_5] : memref<4x128xf32, #tpu.memory_space<vmem>>, vector<4x128xf32>
    tpu.vector_store %arg4[%c0_4, %c0_5], %22 {strides = array<i32>} : memref<4x128xf32, #tpu.memory_space<vmem>>, vector<4x128xf32>,
    return
  }
  func.func @transform_0(%arg0: i32, %arg1: i32) -> (i32, i32) {
    %c0_i32 = arith.constant 0 : i32
    %c0_i32_0 = arith.constant 0 : i32
    return %arg0, %c0_i32 : i32, i32
  }
  func.func @transform_1(%arg0: i32, %arg1: i32) -> (i32, i32) {
    %c0_i32 = arith.constant 0 : i32
    %c0_i32_0 = arith.constant 0 : i32
    return %c0_i32, %arg1 : i32, i32
  }
  func.func @transform_2(%arg0: i32, %arg1: i32) -> (i32, i32) {
    %c0_i32 = arith.constant 0 : i32
    return %arg0, %arg1 : i32, i32
  }
}

</mosaic_0001>

<llo_original>
// kernel: tpu_custom_call.1
$region0: #{tpu_custom_call.1}
  #allocation0 [shape = 'u32[]', space=smem, size = 0x4, offset = 0x4, fixed_abs, tag = 'smem constant byte address 0x4 - core index']
  #allocation1 [shape = 'u32[144,128]{1,0:T(1,128)}', space=vmem, size = 0x12000, scoped, tag = 'internal scratch']
  %s0 = inlined_call_operand.hbm [shape: f32[4,4], index: 0, kind: input, shape index: {}]
  %s1 = inlined_call_operand.hbm [shape: f32[2,128], index: 1, kind: input, shape index: {}]
  %s2 = inlined_call_operand.hbm [shape: f32[4,128], index: 2, kind: output, shape index: {}]
  %s3 = sld [smem:[#allocation0]]
  $region26: #{tpu_custom_call.1} parent=0
    _
  %s5 = ssub.s32 1, %s3
  %s6 = scalar_select 0, %s5, %s3
  $region1: #{tpu_custom_call.1} parent=0
    #allocation2 [shape = 'u8[2048]{0}', space=vmem, size = 0x800, scoped, tag = 'input window, operand 0, single buffered']
    #allocation3 [shape = 's32[1]{0}', space=sflag, size = 0x4, scoped, tag = 'scoped memory for tpu_custom_call.1']
    #allocation4 [shape = 's32[1]{0}', space=sflag, size = 0x4, scoped, tag = 'scoped memory for tpu_custom_call.1']
    #allocation5 [shape = 'u8[1024]{0}', space=vmem, size = 0x400, scoped, tag = 'input window, operand 1, single buffered']
    #allocation6 [shape = 's32[1]{0}', space=sflag, size = 0x4, scoped, tag = 'scoped memory for tpu_custom_call.1']
    #allocation7 [shape = 'u8[2048]{0}', space=vmem, size = 0x800, scoped, tag = 'output window, operand 0, single buffered']
    %7 = vsyncpa [#allocation3], 0
    %8 = vsyncpa [#allocation6], 0
    %9 = vsyncpa [#allocation4], 0
    // Predicated region
    $region2: #{tpu_custom_call.1} parent=1 // pred_check
      _
    $region3: #{tpu_custom_call.1} parent=1 // pred_check_branch
      %11 = sbr.rel (0) target = $region5
    $region4: #{tpu_custom_call.1} parent=1 // pred_region
      %s13 = ssub.s32 64, 64
      %14 = vsyncadd [#allocation3], %s13
      %s16 = sshll.u32 [#allocation2], 4
      %s17 = int_to_ptr.vmem [resolvable:$true] %s16
      %19 = dma.hbm_to_vmem [thread:$0]  %s0, 64, %s17, [#allocation3]
    $region5: #{tpu_custom_call.1} parent=1 // pred_fallthru
      _
    // Predicated region
    $region6: #{tpu_custom_call.1} parent=1 // pred_check
      _
    $region7: #{tpu_custom_call.1} parent=1 // pred_check_branch
      %21 = sbr.rel (0) target = $region9
    $region8: #{tpu_custom_call.1} parent=1 // pred_region
      %s23 = ssub.s32 32, 32
      %24 = vsyncadd [#allocation6], %s23
      %s26 = sshll.u32 [#allocation5], 4
      %s27 = int_to_ptr.vmem [resolvable:$true] %s26
      %29 = dma.hbm_to_vmem [thread:$0]  %s1, 32, %s27, [#allocation6]
    $region9: #{tpu_custom_call.1} parent=1 // pred_fallthru
      _
    // Predicated region
    $region10: #{tpu_custom_call.1} parent=1 // pred_check
      _
    $region11: #{tpu_custom_call.1} parent=1 // pred_check_branch
      %31 = sbr.rel (0) target = $region13
    $region12: #{tpu_custom_call.1} parent=1 // pred_region
      %32 = dma.done [#allocation3], 64
    $region13: #{tpu_custom_call.1} parent=1 // pred_fallthru
      _
    // Predicated region
    $region14: #{tpu_custom_call.1} parent=1 // pred_check
      _
    $region15: #{tpu_custom_call.1} parent=1 // pred_check_branch
      %34 = sbr.rel (0) target = $region17
    $region16: #{tpu_custom_call.1} parent=1 // pred_region
      %35 = dma.done [#allocation6], 32
    $region17: #{tpu_custom_call.1} parent=1 // pred_fallthru
      _
    %v36 = vld [vmem:[#allocation2] sm:$0xf]
    %v37 = vld [vmem:[#allocation5] sm:$0x1]
    %v38 = vld [vmem:[#allocation5 + $0x1] sm:$0x1]
    %40 = vset.pattern.permute.xlu0 0
    %41 = vperm.xlu0 %40, %v36
    %v42 = vpop.permute.xlu0 %41
    %44 = vset.pattern.permute.xlu0 1
    %45 = vperm.xlu0 %44, %v36
    %v46 = vpop.permute.xlu0 %45
    %48 = vset.pattern.permute.xlu0 2
    %49 = vperm.xlu0 %48, %v36
    %v50 = vpop.permute.xlu0 %49
    %52 = vset.pattern.permute.xlu0 3
    %53 = vperm.xlu0 %52, %v36
    %v54 = vpop.permute.xlu0 %53
    %vm56 = vcmask 261120
    %v57 = vsel %vm56, %v42, %v46
    %vm58 = vcmask 523264
    %v59 = vsel %vm58, %v57, %v50
    %vm60 = vcmask 785408
    %v61 = vsel %vm60, %v59, %v54
    %v62 = vlaneseq
    %v63 = vshrl.u32 %v62, 7
    %v64 = vsub.s32 0, %v63
    %v65 = vrot.slane %v37, %v64
    %v66 = vmul.f32 %v61, %v65
    %v67 = vlaneseq
    %v68 = vshrl.u32 %v67, 7
    %v69 = vsub.s32 0, %v68
    %v70 = vrot.slane %v38, %v69
    %v71 = vadd.f32 %v66, %v70
    %v72 = vand.u32 2147483647, %v71
    %vm73 = vcmp.le.f32.partialorder %v72, 0.7853982
    %vm74 = vcmp.lt.s32.totalorder %v71, 0
    %v75 = vand.u32 %v71, 2139095040
    %v76 = vshrl.u32 %v75, 23
    %v77 = vsub.s32 %v76, 127
    %v78 = vand.u32 2147483647, %v71
    %v79 = vand.u32 %v78, 8388607
    %v80 = vor.u32 %v79, 8388608
    %v81 = vsub.s32 0, %v80
    %v82 = vadd.s32 %v77, 1
    %vm83 = vcmp.gt.s32.totalorder %v82, 0
    %v84 = vsel %vm83, %v82, 0
    %v85 = vshrl.u32 %v84, 5
    %v86 = vand.u32 %v84, 31
    %v87 = vsub.s32 32, %v86
    %v88 = vshrl.u32 683565275, %v87
    %v89 = vshll.u32 683565275, %v86
    %v90 = vshrl.u32 2475754826, %v87
    %v91 = vor.u32 %v89, %v90
    %v92 = vshll.u32 2475754826, %v86
    %v93 = vshrl.u32 2131351028, %v87
    %v94 = vor.u32 %v92, %v93
    %v95 = vshll.u32 2131351028, %v86
    %v96 = vshrl.u32 2102212464, %v87
    %v97 = vor.u32 %v95, %v96
    %v98 = vshll.u32 2102212464, %v86
    %v99 = vshrl.u32 920167782, %v87
    %v100 = vor.u32 %v98, %v99
    %v101 = vshll.u32 920167782, %v86
    %v102 = vshrl.u32 1326507024, %v87
    %v103 = vor.u32 %v101, %v102
    %vm104 = vcmp.lt.s32.totalorder %v85, 1
    %vm105 = vcmp.lt.s32.totalorder %v85, 2
    %vm106 = vcmp.lt.s32.totalorder %v85, 3
    %vm107 = vcmp.lt.s32.totalorder %v85, 4
    %v108 = vsel %vm104, %v88, %v91
    %v109 = vsel %vm107, %v97, 2102212464
    %v110 = vsel %vm106, %v94, %v109
    %v111 = vsel %vm105, %v108, %v110
    %v112 = vsel %vm104, %v91, %v94
    %v113 = vsel %vm107, %v100, 920167782
    %v114 = vsel %vm106, %v97, %v113
    %v115 = vsel %vm105, %v112, %v114
    %v116 = vsel %vm104, %v94, %v97
    %v117 = vsel %vm107, %v103, 1326507024
    %v118 = vsel %vm106, %v100, %v117
    %v119 = vsel %vm105, %v116, %v118
    %v120 = vshll.u32 %v80, 8
    %v121 = vmul.u32.u64.compose %v120, %v119
    %v122 = vextract.low.u32 %v121
    %v123 = vextract.high.u32 %v121
    %v124 = vmul.u32.u64.compose %v120, %v115
    %v125 = vextract.low.u32 %v124
    %v126 = vextract.high.u32 %v124
    %v127 = vmul.u32 %v120, %v111
    %v128 = vadd.s32 %v123, %v125
    %vm129 = vc.u32 %v123, %v125
    %v130 = vadd.s32 %v126, 1
    %v131 = vsel %vm129, %v130, %v126
    %v132 = vadd.s32 %v127, %v131
    %v133 = vadd.s32 %v132, 536870912
    %v134 = vshrl.u32 %v133, 30
    %v135 = vshll.u32 %v134, 30
    %v136 = vsub.s32 %v132, %v135
    %vm137 = vcmp.lt.s32.totalorder %v136, 0
    %v138 = vsub.s32 0, %v136
    %v139 = vsel %vm137, %v138, %v136
    %v140 = vclz %v139
    %v141 = vsub.s32 %v140, 2
    %vm142 = vcmp.gt.s32.totalorder 0, %v141
    %v143 = vsel %vm142, 0, %v141
    %v144 = vsub.s32 32, %v143
    %v145 = vshll.u32 %v136, %v143
    %v146 = vshrl.u32 %v128, %v144
    %v147 = vor.u32 %v145, %v146
    %v148 = vsub.s32 4294967266, %v143
    %v149 = vadd.s32 %v148, 127
    %v150 = vshll.u32 %v149, 23
    %v151 = vor.u32 4788187, %v150
    %v152 = vand.u32 2147483647, %v151
    %v154 = vcvt.s32.f32 %v147
    %v155 = vmul.f32 %v154, %v152
    %v156 = vxor.u32 %v155, 2147483648
    %v157 = vsel %vm74, %v156, %v155
    %v158 = vsub.s32 4, %v134
    %v159 = vsel %vm74, %v158, %v134
    %v160 = vsel %vm73, %v71, %v157
    %v161 = vsel %vm73, 0, %v159
    %v162 = vcosq.f32.pop %v160
    %v163 = vsinq.f32.pop %v160
    %vm164 = vweird.f32 %v71
    %v165 = vand.u32 %v161, 3
    %vm166 = vcmp.lt.s32.totalorder %v165, 2
    %vm167 = vcmp.eq.s32.totalorder %v165, 0
    %v168 = vxor.u32 %v163, 2147483648
    %v169 = vsel %vm167, %v162, %v168
    %vm170 = vcmp.eq.s32.totalorder %v165, 2
    %v171 = vxor.u32 %v162, 2147483648
    %v172 = vsel %vm170, %v171, %v163
    %v173 = vsel %vm166, %v169, %v172
    %v174 = vsel %vm164, nan, %v173
    %v175 = vmul.f32 %v174, 0.17677669
    %176 = vst [vmem:[#allocation7] sm:$0xf] %v175
    // Predicated region
    $region18: #{tpu_custom_call.1} parent=1 // pred_check
      _
    $region19: #{tpu_custom_call.1} parent=1 // pred_check_branch
      %178 = sbr.rel (0) target = $region21
    $region20: #{tpu_custom_call.1} parent=1 // pred_region
      %s180 = ssub.s32 64, 64
      %181 = vsyncadd [#allocation4], %s180
      %s183 = sshll.u32 [#allocation7], 4
      %s184 = int_to_ptr.vmem [resolvable:$true] %s183
      %186 = dma.vmem_to_hbm [thread:$0]  %s184, 64, %s2, [#allocation4]
    $region21: #{tpu_custom_call.1} parent=1 // pred_fallthru
      _
    // Predicated region
    $region22: #{tpu_custom_call.1} parent=1 // pred_check
      _
    $region23: #{tpu_custom_call.1} parent=1 // pred_check_branch
      %188 = sbr.rel (0) target = $region25
    $region24: #{tpu_custom_call.1} parent=1 // pred_region
      %189 = dma.done [#allocation4], 64
    $region25: #{tpu_custom_call.1} parent=1 // pred_fallthru
      _
    %190 = vsyncpa [#allocation3], 1
    %191 = vsyncpa [#allocation6], 1
    %192 = vsyncpa [#allocation4], 1

</llo_original>
